<compile_context>
chip_gen: v6e
topology: v6e:2x2x1
jax: 0.10.0
libtpu: 0.0.40
codegen_flags: <defaults>
</compile_context>

<pallas_src>
import functools

import jax
import jax.numpy as jnp
from jax.experimental import pallas as pl
from jax.experimental.pallas import tpu as pltpu


def _smape_kernel(forecast_ref, target_ref, mask_ref, out_ref, *, total_rows):
    f = forecast_ref[...].astype(jnp.float32)
    t = target_ref[...].astype(jnp.float32)
    m = mask_ref[...].astype(jnp.float32)

    num = jnp.abs(f - t)
    den = jnp.abs(f) + jnp.abs(t)
    # divide_no_nan: for finite inputs num <= den, so only 0/0 needs the safe-den
    # guard (num == 0 there, giving exactly 0). The NaN/+Inf select below covers
    # non-finite inputs for exact parity with the PyTorch divide_no_nan.
    safe_den = jnp.where(den == 0.0, 1.0, den)
    ratio = num / safe_den
    ratio = jnp.where(jnp.isnan(ratio) | (ratio == jnp.inf), 0.0, ratio)

    # The last grid block may extend past the true batch; that region of the input
    # blocks is undefined, so select (not multiply) to kill any garbage NaN/Inf.
    tb = f.shape[0]
    row_ids = jax.lax.broadcasted_iota(jnp.int32, f.shape, 0) + pl.program_id(0) * tb
    contrib = jnp.where(row_ids < total_rows, ratio * m, 0.0)

    # Per-lane column partials: no cross-lane reduction, lane-dense-ish store.
    out_ref[...] = jnp.sum(contrib, axis=0, keepdims=True)


def _choose_row_tile(B: int, T: int):
    """Pick (row_tile, num_blocks) for (B, T) f32 inputs.

    Targets ~6 MiB of f32 per input block, but keeps >= 4 grid blocks whenever
    the batch allows it (v7x megacore sharding + DMA double-buffering on all
    generations). Never pads: the last (possibly partial) block is masked
    in-kernel against the true B.
    """
    target_block_bytes = 6 << 20
    bytes_per_row = max(T, 1) * 4
    rows = max(8, (target_block_bytes // bytes_per_row) // 8 * 8)
    if B >= 32:
        # Keep at least ~4 grid blocks for pipelining / megacore.
        rows = min(rows, max(8, (B // 4) // 8 * 8))
    if rows >= B:
        # Single full-extent block (full dims need not be multiples of 8/128).
        return B, 1
    num_blocks = -(-B // rows)
    return rows, num_blocks


def smape_loss(forecast: jax.Array, target: jax.Array, mask: jax.Array,
               insample=None, freq=None) -> jax.Array:
    """Pallas TPU sMAPE loss. forecast/target/mask: (batch, time). Returns scalar f32.

    `insample` / `freq` are accepted for signature parity with the PyTorch module
    but are unused (as in the reference forward).
    """
    assert forecast.shape == target.shape == mask.shape
    B, T = forecast.shape

    tb, num_blocks = _choose_row_tile(B, T)
    kernel = functools.partial(_smape_kernel, total_rows=B)

    # TODO(synk): for T not a multiple of 128, a zero-copy lane-dense reshape of the
    # flattened (B*T,) data would recover the last ~25% of vreg lane utilization;
    # skipped here since the kernel stays HBM-bound on all current generations.
    in_spec = pl.BlockSpec((tb, T), lambda i: (i, 0))
    partials = pl.pallas_call(
        kernel,
        out_shape=jax.ShapeDtypeStruct((num_blocks, T), jnp.float32),
        grid=(num_blocks,),
        in_specs=[in_spec, in_spec, in_spec],
        out_specs=pl.BlockSpec((1, T), lambda i: (i, 0)),
        compiler_params=pltpu.CompilerParams(
            dimension_semantics=("parallel",),
            vmem_limit_bytes=48 << 20,  # 3 inputs x 2 buffers x ~6 MiB, < 64 MiB v7x VMEM
        ),
    )(forecast, target, mask)

    return (200.0 / (B * T)) * jnp.sum(partials)


def _smape_ref(forecast, target, mask):
    num = jnp.abs(forecast - target)
    den = jnp.abs(forecast) + jnp.abs(target)
    ratio = num / den
    ratio = jnp.where(jnp.isnan(ratio) | (ratio == jnp.inf), 0.0, ratio)
    return 200.0 * jnp.mean(ratio * mask)


if __name__ == "__main__":
    key = jax.random.PRNGKey(0)

    # Case 1: aligned shapes, with exact 0/0 entries.
    k1, k2, k3 = jax.random.split(key, 3)
    B, T = 8, 128
    forecast = jax.random.normal(k1, (B, T), dtype=jnp.float32)
    target = jax.random.normal(k2, (B, T), dtype=jnp.float32)
    forecast = forecast.at[:, :4].set(0.0)
    target = target.at[:, :4].set(0.0)
    mask = (jax.random.uniform(k3, (B, T)) > 0.3).astype(jnp.float32)

    loss = smape_loss(forecast, target, mask)
    jax.block_until_ready(loss)
    ref = _smape_ref(forecast, target, mask)
    assert jnp.allclose(loss, ref, rtol=1e-5, atol=1e-5), (loss, ref)

    # Case 2: unaligned batch and T (no padding path any more; single full block),
    # plus a non-finite input to exercise divide_no_nan parity.
    k4, k5, k6 = jax.random.split(jax.random.PRNGKey(1), 3)
    B2, T2 = 10, 96
    forecast2 = jax.random.normal(k4, (B2, T2), dtype=jnp.float32)
    target2 = jax.random.normal(k5, (B2, T2), dtype=jnp.float32)
    forecast2 = forecast2.at[:, :2].set(0.0)
    target2 = target2.at[:, :2].set(0.0)
    forecast2 = forecast2.at[0, 5].set(jnp.inf)  # Inf/Inf -> NaN -> zeroed, like torch
    mask2 = (jax.random.uniform(k6, (B2, T2)) > 0.3).astype(jnp.float32)

    loss2 = smape_loss(forecast2, target2, mask2)
    jax.block_until_ready(loss2)
    ref2 = _smape_ref(forecast2, target2, mask2)
    assert jnp.allclose(loss2, ref2, rtol=1e-5, atol=1e-5), (loss2, ref2)

    # Case 3: batch large enough to get multiple grid blocks with a partial,
    # in-kernel-masked last block (B=100, tb=24 -> 5 blocks, rows 96..99 valid).
    k7, k8, k9 = jax.random.split(jax.random.PRNGKey(2), 3)
    B3, T3 = 100, 40
    forecast3 = jax.random.normal(k7, (B3, T3), dtype=jnp.float32)
    target3 = jax.random.normal(k8, (B3, T3), dtype=jnp.float32)
    forecast3 = forecast3.at[:, :3].set(0.0)
    target3 = target3.at[:, :3].set(0.0)
    mask3 = (jax.random.uniform(k9, (B3, T3)) > 0.3).astype(jnp.float32)

    loss3 = smape_loss(forecast3, target3, mask3)
    jax.block_until_ready(loss3)
    ref3 = _smape_ref(forecast3, target3, mask3)
    assert jnp.allclose(loss3, ref3, rtol=1e-5, atol=1e-5), (loss3, ref3)

    print("KERNEL_OK")
</pallas_src>

<mosaic_0001>
module attributes {stable_mosaic.version = 11 : i64} {
  func.func @_smape_kernel(%arg0: i32, %arg1: memref<8x128xf32, #tpu.memory_space<vmem>>, %arg2: memref<8x128xf32, #tpu.memory_space<vmem>>, %arg3: memref<8x128xf32, #tpu.memory_space<vmem>>, %arg4: memref<1x128xf32, #tpu.memory_space<vmem>>) attributes {dimension_semantics = [#tpu.dimension_semantics<parallel>], iteration_bounds = array<i64: 1>, scalar_prefetch = 0 : i64, scratch_operands = 0 : i64, tpu.core_type = #tpu.core_type<tc>, window_params = [{transform_indices = @transform_0, window_bounds = array<i64: 8, 128>}, {transform_indices = @transform_1, window_bounds = array<i64: 8, 128>}, {transform_indices = @transform_2, window_bounds = array<i64: 8, 128>}, {transform_indices = @transform_3, window_bounds = array<i64: 1, 128>}]} {
    %c0 = arith.constant 0 : index
    %c0_0 = arith.constant 0 : index
    %0 = vector.load %arg1[%c0, %c0_0] : memref<8x128xf32, #tpu.memory_space<vmem>>, vector<8x128xf32>
    %c0_1 = arith.constant 0 : index
    %c0_2 = arith.constant 0 : index
    %1 = vector.load %arg2[%c0_1, %c0_2] : memref<8x128xf32, #tpu.memory_space<vmem>>, vector<8x128xf32>
    %c0_3 = arith.constant 0 : index
    %c0_4 = arith.constant 0 : index
    %2 = vector.load %arg3[%c0_3, %c0_4] : memref<8x128xf32, #tpu.memory_space<vmem>>, vector<8x128xf32>
    %3 = arith.subf %0, %1 : vector<8x128xf32>
    %4 = math.absf %3 : vector<8x128xf32>
    %5 = math.absf %0 : vector<8x128xf32>
    %6 = math.absf %1 : vector<8x128xf32>
    %7 = arith.addf %5, %6 : vector<8x128xf32>
    %cst = arith.constant 0.000000e+00 : f32
    %8 = vector.broadcast %cst : f32 to vector<8x128xf32>
    %9 = arith.cmpf oeq, %7, %8 : vector<8x128xf32>
    %cst_5 = arith.constant 1.000000e+00 : f32
    %10 = vector.broadcast %cst_5 : f32 to vector<8x128xf32>
    %11 = arith.select %9, %10, %7 : vector<8x128xi1>, vector<8x128xf32>
    %12 = arith.divf %4, %11 : vector<8x128xf32>
    %13 = arith.cmpf one, %12, %12 : vector<8x128xf32>
    %cst_6 = arith.constant 0x7F800000 : f32
    %14 = vector.broadcast %cst_6 : f32 to vector<8x128xf32>
    %15 = arith.cmpf oeq, %12, %14 : vector<8x128xf32>
    %16 = arith.ori %13, %15 : vector<8x128xi1>
    %cst_7 = arith.constant 0.000000e+00 : f32
    %17 = vector.broadcast %cst_7 : f32 to vector<8x128xf32>
    %18 = arith.select %16, %17, %12 : vector<8x128xi1>, vector<8x128xf32>
    %19 = tpu.iota {dimensions = array<i32: 0>} : vector<8x128xi32>
    %c8_i32 = arith.constant 8 : i32
    %20 = arith.muli %arg0, %c8_i32 : i32
    %21 = vector.broadcast %20 : i32 to vector<8x128xi32>
    %22 = arith.addi %19, %21 : vector<8x128xi32>
    %c8_i32_8 = arith.constant 8 : i32
    %23 = vector.broadcast %c8_i32_8 : i32 to vector<8x128xi32>
    %24 = arith.cmpi slt, %22, %23 : vector<8x128xi32>
    %25 = arith.mulf %18, %2 : vector<8x128xf32>
    %cst_9 = arith.constant 0.000000e+00 : f32
    %26 = vector.broadcast %cst_9 : f32 to vector<8x128xf32>
    %27 = arith.select %24, %25, %26 : vector<8x128xi1>, vector<8x128xf32>
    %cst_10 = arith.constant dense<0.000000e+00> : vector<128xf32>
    %28 = vector.multi_reduction <add>, %27, %cst_10 [0] : vector<8x128xf32> to vector<128xf32>
    %29 = vector.shape_cast %28 : vector<128xf32> to vector<1x128xf32>
    %c0_11 = arith.constant 0 : index
    %c0_12 = arith.constant 0 : index
    %30 = vector.load %arg4[%c0_11, %c0_12] : memref<1x128xf32, #tpu.memory_space<vmem>>, vector<1x128xf32>
    tpu.vector_store %arg4[%c0_11, %c0_12], %29 {strides = array<i32>} : memref<1x128xf32, #tpu.memory_space<vmem>>, vector<1x128xf32>,
    return
  }
  func.func @transform_0(%arg0: i32) -> (i32, i32) {
    %c0_i32 = arith.constant 0 : i32
    %c0_i32_0 = arith.constant 0 : i32
    return %arg0, %c0_i32 : i32, i32
  }
  func.func @transform_1(%arg0: i32) -> (i32, i32) {
    %c0_i32 = arith.constant 0 : i32
    %c0_i32_0 = arith.constant 0 : i32
    return %arg0, %c0_i32 : i32, i32
  }
  func.func @transform_2(%arg0: i32) -> (i32, i32) {
    %c0_i32 = arith.constant 0 : i32
    %c0_i32_0 = arith.constant 0 : i32
    return %arg0, %c0_i32 : i32, i32
  }
  func.func @transform_3(%arg0: i32) -> (i32, i32) {
    %c0_i32 = arith.constant 0 : i32
    %c0_i32_0 = arith.constant 0 : i32
    return %arg0, %c0_i32 : i32, i32
  }
}

</mosaic_0001>

<llo_original>
// kernel: tpu_custom_call.1
$region0: #{tpu_custom_call.1}
  #allocation0 [shape = 'u32[]', space=smem, size = 0x4, offset = 0x4, fixed_abs, tag = 'smem constant byte address 0x4 - core index']
  #allocation1 [shape = 'u32[144,128]{1,0:T(1,128)}', space=vmem, size = 0x12000, scoped, tag = 'internal scratch']
  %s0 = inlined_call_operand.hbm [shape: f32[8,128], index: 0, kind: input, shape index: {}]
  %s1 = inlined_call_operand.hbm [shape: f32[8,128], index: 1, kind: input, shape index: {}]
  %s2 = inlined_call_operand.hbm [shape: f32[8,128], index: 2, kind: input, shape index: {}]
  %s3 = inlined_call_operand.hbm [shape: f32[1,128], index: 3, kind: output, shape index: {}]
  %s4 = sld [smem:[#allocation0]]
  $region34: #{tpu_custom_call.1} parent=0
    _
  %s6 = ssub.s32 1, %s4
  %s7 = scalar_select 0, %s6, %s4
  $region1: #{tpu_custom_call.1} parent=0
    #allocation2 [shape = 'u8[4096]{0}', space=vmem, size = 0x1000, scoped, tag = 'input window, operand 0, single buffered']
    #allocation3 [shape = 's32[1]{0}', space=sflag, size = 0x4, scoped, tag = 'scoped memory for tpu_custom_call.1']
    #allocation4 [shape = 's32[1]{0}', space=sflag, size = 0x4, scoped, tag = 'scoped memory for tpu_custom_call.1']
    #allocation5 [shape = 'u8[4096]{0}', space=vmem, size = 0x1000, scoped, tag = 'input window, operand 1, single buffered']
    #allocation6 [shape = 's32[1]{0}', space=sflag, size = 0x4, scoped, tag = 'scoped memory for tpu_custom_call.1']
    #allocation7 [shape = 'u8[4096]{0}', space=vmem, size = 0x1000, scoped, tag = 'input window, operand 2, single buffered']
    #allocation8 [shape = 'u8[512]{0}', space=vmem, size = 0x400, scoped, tag = 'output window, operand 0, single buffered']
    %8 = vsyncpa [#allocation3], 0
    %9 = vsyncpa [#allocation6], 0
    %10 = vsyncpa [#allocation4], 0
    // Predicated region
    $region2: #{tpu_custom_call.1} parent=1 // pred_check
      _
    $region3: #{tpu_custom_call.1} parent=1 // pred_check_branch
      %12 = sbr.rel (0) target = $region5
    $region4: #{tpu_custom_call.1} parent=1 // pred_region
      %s14 = ssub.s32 128, 128
      %15 = vsyncadd [#allocation3], %s14
      %s17 = sshll.u32 [#allocation2], 4
      %s18 = int_to_ptr.vmem [resolvable:$true] %s17
      %20 = dma.hbm_to_vmem [thread:$0]  %s0, 128, %s18, [#allocation3]
    $region5: #{tpu_custom_call.1} parent=1 // pred_fallthru
      _
    // Predicated region
    $region6: #{tpu_custom_call.1} parent=1 // pred_check
      _
    $region7: #{tpu_custom_call.1} parent=1 // pred_check_branch
      %22 = sbr.rel (0) target = $region9
    $region8: #{tpu_custom_call.1} parent=1 // pred_region
      %s24 = ssub.s32 128, 128
      %25 = vsyncadd [#allocation6], %s24
      %s27 = sshll.u32 [#allocation5], 4
      %s28 = int_to_ptr.vmem [resolvable:$true] %s27
      %30 = dma.hbm_to_vmem [thread:$0]  %s1, 128, %s28, [#allocation6]
    $region9: #{tpu_custom_call.1} parent=1 // pred_fallthru
      _
    // Predicated region
    $region10: #{tpu_custom_call.1} parent=1 // pred_check
      _
    $region11: #{tpu_custom_call.1} parent=1 // pred_check_branch
      %32 = sbr.rel (0) target = $region13
    $region12: #{tpu_custom_call.1} parent=1 // pred_region
      %s34 = ssub.s32 128, 128
      %35 = vsyncadd [#allocation6], %s34
      %s37 = sshll.u32 [#allocation7], 4
      %s38 = int_to_ptr.vmem [resolvable:$true] %s37
      %40 = dma.hbm_to_vmem [thread:$0]  %s2, 128, %s38, [#allocation6]
    $region13: #{tpu_custom_call.1} parent=1 // pred_fallthru
      _
    // Predicated region
    $region14: #{tpu_custom_call.1} parent=1 // pred_check
      _
    $region15: #{tpu_custom_call.1} parent=1 // pred_check_branch
      %42 = sbr.rel (0) target = $region17
    $region16: #{tpu_custom_call.1} parent=1 // pred_region
      %43 = dma.done [#allocation3], 128
    $region17: #{tpu_custom_call.1} parent=1 // pred_fallthru
      _
    // Predicated region
    $region18: #{tpu_custom_call.1} parent=1 // pred_check
      _
    $region19: #{tpu_custom_call.1} parent=1 // pred_check_branch
      %45 = sbr.rel (0) target = $region21
    $region20: #{tpu_custom_call.1} parent=1 // pred_region
      %46 = dma.done [#allocation6], 128
    $region21: #{tpu_custom_call.1} parent=1 // pred_fallthru
      _
    // Predicated region
    $region22: #{tpu_custom_call.1} parent=1 // pred_check
      _
    $region23: #{tpu_custom_call.1} parent=1 // pred_check_branch
      %48 = sbr.rel (0) target = $region25
    $region24: #{tpu_custom_call.1} parent=1 // pred_region
      %49 = dma.done [#allocation6], 128
    $region25: #{tpu_custom_call.1} parent=1 // pred_fallthru
      _
    %v50 = vld [vmem:[#allocation2] sm:$0xff]
    %v51 = vld [vmem:[#allocation5] sm:$0xff]
    %v52 = vld [vmem:[#allocation7] sm:$0xff]
    %v53 = vsub.f32 %v50, %v51
    %v54 = vand.u32 2147483647, %v53
    %v55 = vand.u32 2147483647, %v50
    %v56 = vand.u32 2147483647, %v51
    %v57 = vadd.f32 %v55, %v56
    %vm58 = vcmp.eq.f32.partialorder %v57, 0.0
    %v59 = vsel %vm58, 1.0, %v57
    %v60 = vrcp.pop %v59
    %v61 = vmul.f32 %v54, %v60
    %vm62 = vcmp.ne.f32.partialorder %v61, %v61
    %vm63 = vcmp.eq.f32.partialorder %v61, inf
    %vm64 = vmor %vm62, %vm63
    %v65 = vsel %vm64, 0.0, %v61
    %v66 = vlaneseq
    %v67 = vshrl.u32 %v66, 7
    %s68 = smul.u32 0, 8
    %v69 = vstv %s68
    %v70 = vadd.s32 %v67, %v69
    %vm71 = vcmp.lt.s32.totalorder %v70, 8
    %v72 = vmul.f32 %v65, %v52
    %v73 = vsel %vm71, %v72, 0.0
    %v74 = vrot.slane %v73, 4
    %v75 = vadd.f32 %v73, %v74
    %v76 = vrot.slane %v75, 2
    %v77 = vadd.f32 %v75, %v76
    %v78 = vrot.slane %v77, 1
    %v79 = vadd.f32 %v77, %v78
    %80 = vst [vmem:[#allocation8] sm:$0x1] %v79
    // Predicated region
    $region26: #{tpu_custom_call.1} parent=1 // pred_check
      _
    $region27: #{tpu_custom_call.1} parent=1 // pred_check_branch
      %82 = sbr.rel (0) target = $region29
    $region28: #{tpu_custom_call.1} parent=1 // pred_region
      %s84 = ssub.s32 16, 16
      %85 = vsyncadd [#allocation4], %s84
      %s87 = sshll.u32 [#allocation8], 4
      %s88 = int_to_ptr.vmem [resolvable:$true] %s87
      %90 = dma.vmem_to_hbm [thread:$0]  %s88, 16, %s3, [#allocation4]
    $region29: #{tpu_custom_call.1} parent=1 // pred_fallthru
      _
    // Predicated region
    $region30: #{tpu_custom_call.1} parent=1 // pred_check
      _
    $region31: #{tpu_custom_call.1} parent=1 // pred_check_branch
      %92 = sbr.rel (0) target = $region33
    $region32: #{tpu_custom_call.1} parent=1 // pred_region
      %93 = dma.done [#allocation4], 16
    $region33: #{tpu_custom_call.1} parent=1 // pred_fallthru
      _
    %94 = vsyncpa [#allocation3], 1
    %95 = vsyncpa [#allocation6], 1
    %96 = vsyncpa [#allocation4], 1

</llo_original>
